<compile_context>
chip_gen: v7x
topology: tpu7x:2x2x1
jax: 0.10.0
libtpu: 0.0.40
codegen_flags: <defaults>
</compile_context>

<pallas_src>
import jax
import jax.numpy as jnp
from jax.experimental import pallas as pl
from jax.experimental.pallas import tpu as pltpu

_LN_EPS = 1e-12


def _erf_poly(z):
    """Abramowitz & Stegun 7.1.26 erf approximation (max abs err ~1.5e-7).

    Used because lax.erf has no reliable Mosaic lowering; exp() is EUP-native.
    """
    p = 0.3275911
    a1, a2, a3, a4, a5 = (0.254829592, -0.284496736, 1.421413741,
                          -1.453152027, 1.061405429)
    s = jnp.where(z >= 0.0, 1.0, -1.0)
    za = jnp.abs(z)
    t = 1.0 / (1.0 + p * za)
    poly = ((((a5 * t + a4) * t + a3) * t + a2) * t + a1) * t
    return s * (1.0 - poly * jnp.exp(-za * za))


def _gelu_erf(x):
    # x * 0.5 * (1 + erf(x / sqrt(2)))  (exact-gelu form from the PyTorch spec)
    return x * 0.5 * (1.0 + _erf_poly(x * 0.7071067811865476))


def intermediate_kernel(x_ref, w1_ref, b1_ref, w2_ref, b2_ref,
                        gamma_ref, beta_ref, out_ref):
    x = x_ref[...]                                   # (TM, H), f32
    mm_dtype = w1_ref.dtype                          # f32 or bf16 (MXU operands only)

    # dense_1: (TM, H) @ (H, F) + (1, F)
    h = jnp.dot(x.astype(mm_dtype), w1_ref[...],
                preferred_element_type=jnp.float32) + b1_ref[...]
    h = _gelu_erf(h)

    # dense_2: (TM, F) @ (F, H) + (1, H)
    h = jnp.dot(h.astype(mm_dtype), w2_ref[...],
                preferred_element_type=jnp.float32) + b2_ref[...]

    # residual + TF-style LayerNorm (eps inside sqrt, biased variance), all f32
    y = h + x
    u = jnp.mean(y, axis=-1, keepdims=True)
    c = y - u
    s = jnp.mean(c * c, axis=-1, keepdims=True)
    yn = c * jax.lax.rsqrt(s + _LN_EPS)              # EUP rsqrt, no VALU divide
    out_ref[...] = gamma_ref[...] * yn + beta_ref[...]


def intermediate_forward(input_tensor, params, *, ablate=0,
                         matmul_dtype=jnp.float32, row_tile=512):
    """input_tensor: (B, S, H).  params: w1 (H,F), b1 (F,), w2 (F,H), b2 (H,),
    ln_w (H,), ln_b (H,)."""
    if ablate == 6:                                   # module's ablation short-circuit
        return input_tensor

    B, S, H = input_tensor.shape
    F = params["w1"].shape[1]
    N = B * S                                         # fold batch into rows

    x2d = input_tensor.reshape(N, H).astype(jnp.float32)
    w1 = params["w1"].astype(matmul_dtype)
    w2 = params["w2"].astype(matmul_dtype)
    b1 = params["b1"].reshape(1, F).astype(jnp.float32)
    b2 = params["b2"].reshape(1, H).astype(jnp.float32)
    gamma = params["ln_w"].reshape(1, H).astype(jnp.float32)
    beta = params["ln_b"].reshape(1, H).astype(jnp.float32)

    tm = N if N <= row_tile else row_tile
    grid = (pl.cdiv(N, tm),)

    # For production-scale H/F on v7x (64 MiB VMEM), add
    # pipeline_mode=pl.Buffered(1) to the grid-invariant weight specs below.
    grid_spec = pltpu.PrefetchScalarGridSpec(
        num_scalar_prefetch=0,
        grid=grid,
        in_specs=[
            pl.BlockSpec((tm, H), lambda i: (i, 0)),   # x rows
            pl.BlockSpec((H, F), lambda i: (0, 0)),    # dense_1 weight (invariant)
            pl.BlockSpec((1, F), lambda i: (0, 0)),    # dense_1 bias
            pl.BlockSpec((F, H), lambda i: (0, 0)),    # dense_2 weight (invariant)
            pl.BlockSpec((1, H), lambda i: (0, 0)),    # dense_2 bias
            pl.BlockSpec((1, H), lambda i: (0, 0)),    # LN weight
            pl.BlockSpec((1, H), lambda i: (0, 0)),    # LN bias
        ],
        out_specs=pl.BlockSpec((tm, H), lambda i: (i, 0)),
    )

    out2d = pl.pallas_call(
        intermediate_kernel,
        out_shape=jax.ShapeDtypeStruct((N, H), jnp.float32),
        grid_spec=grid_spec,
        compiler_params=pltpu.CompilerParams(
            dimension_semantics=("parallel",)),
    )(x2d, w1, b1, w2, b2, gamma, beta)

    return out2d.reshape(B, S, H)


def reference_jax(input_tensor, params, *, ablate=0):
    """Pure-JAX reference matching the PyTorch forward (eval mode)."""
    if ablate == 6:
        return input_tensor
    x = input_tensor.astype(jnp.float32)
    h = x @ params["w1"] + params["b1"]
    h = h * 0.5 * (1.0 + jax.scipy.special.erf(h / jnp.sqrt(2.0)))  # exact gelu
    h = h @ params["w2"] + params["b2"]
    y = h + x
    u = jnp.mean(y, axis=-1, keepdims=True)
    s = jnp.mean((y - u) ** 2, axis=-1, keepdims=True)
    yn = (y - u) / jnp.sqrt(s + _LN_EPS)
    return params["ln_w"] * yn + params["ln_b"]


if __name__ == "__main__":
    B, S, H, MULT = 2, 8, 32, 4        # batch, seq, hidden_size, ffn_multiplier
    F = H * MULT

    key = jax.random.PRNGKey(0)
    k_w1, k_b1, k_w2, k_b2, k_x = jax.random.split(key, 5)

    params = {
        "w1": jax.random.normal(k_w1, (H, F), jnp.float32) * 0.02,
        "b1": jax.random.normal(k_b1, (F,), jnp.float32) * 0.02,
        "w2": jax.random.normal(k_w2, (F, H), jnp.float32) * 0.02,
        "b2": jax.random.normal(k_b2, (H,), jnp.float32) * 0.02,
        "ln_w": jnp.ones((H,), jnp.float32),
        "ln_b": jnp.zeros((H,), jnp.float32),
    }
    input_tensor = jax.random.normal(k_x, (B, S, H), jnp.float32)

    ref = reference_jax(input_tensor, params)

    # f32 path (tight correctness check)
    out = jax.block_until_ready(intermediate_forward(input_tensor, params))
    assert out.shape == (B, S, H)
    assert jnp.allclose(out, ref, atol=1e-5, rtol=1e-5), "f32 mismatch vs reference"

    # bf16-MXU-operand path (production option per perf review); looser tolerance.
    out_bf16 = jax.block_until_ready(
        intermediate_forward(input_tensor, params, matmul_dtype=jnp.bfloat16))
    assert jnp.allclose(out_bf16, ref, atol=5e-2, rtol=5e-2), "bf16 mismatch vs reference"

    print("KERNEL_OK")
</pallas_src>

<mosaic_0001>
module attributes {stable_mosaic.version = 11 : i64} {
  func.func @intermediate_kernel(%arg0: i32, %arg1: memref<16x32xf32, #tpu.memory_space<vmem>>, %arg2: memref<32x128xf32, #tpu.memory_space<vmem>>, %arg3: memref<1x128xf32, #tpu.memory_space<vmem>>, %arg4: memref<128x32xf32, #tpu.memory_space<vmem>>, %arg5: memref<1x32xf32, #tpu.memory_space<vmem>>, %arg6: memref<1x32xf32, #tpu.memory_space<vmem>>, %arg7: memref<1x32xf32, #tpu.memory_space<vmem>>, %arg8: memref<16x32xf32, #tpu.memory_space<vmem>>) attributes {dimension_semantics = [#tpu.dimension_semantics<parallel>], iteration_bounds = array<i64: 1>, scalar_prefetch = 0 : i64, scratch_operands = 0 : i64, tpu.core_type = #tpu.core_type<tc>, window_params = [{transform_indices = @transform_0, window_bounds = array<i64: 16, 32>}, {pipeline_mode = #tpu.pipeline_mode<synchronous>, transform_indices = @transform_1, window_bounds = array<i64: 32, 128>}, {pipeline_mode = #tpu.pipeline_mode<synchronous>, transform_indices = @transform_2, window_bounds = array<i64: 1, 128>}, {pipeline_mode = #tpu.pipeline_mode<synchronous>, transform_indices = @transform_3, window_bounds = array<i64: 128, 32>}, {pipeline_mode = #tpu.pipeline_mode<synchronous>, transform_indices = @transform_4, window_bounds = array<i64: 1, 32>}, {pipeline_mode = #tpu.pipeline_mode<synchronous>, transform_indices = @transform_5, window_bounds = array<i64: 1, 32>}, {pipeline_mode = #tpu.pipeline_mode<synchronous>, transform_indices = @transform_6, window_bounds = array<i64: 1, 32>}, {transform_indices = @transform_7, window_bounds = array<i64: 16, 32>}]} {
    %c0 = arith.constant 0 : index
    %c0_0 = arith.constant 0 : index
    %0 = vector.load %arg1[%c0, %c0_0] : memref<16x32xf32, #tpu.memory_space<vmem>>, vector<16x32xf32>
    %c0_1 = arith.constant 0 : index
    %c0_2 = arith.constant 0 : index
    %1 = vector.load %arg2[%c0_1, %c0_2] : memref<32x128xf32, #tpu.memory_space<vmem>>, vector<32x128xf32>
    %cst = arith.constant dense<0.000000e+00> : vector<16x128xf32>
    %2 = tpu.matmul %0, %1, %cst {dimension_numbers = #tpu.dot_dimension_numbers<[1], [0], [0], [1], [0, 0, 1, 1], [], []>} : vector<16x32xf32>, vector<32x128xf32>, vector<16x128xf32> -> vector<16x128xf32>
    %c0_3 = arith.constant 0 : index
    %c0_4 = arith.constant 0 : index
    %3 = vector.load %arg3[%c0_3, %c0_4] : memref<1x128xf32, #tpu.memory_space<vmem>>, vector<1x128xf32>
    %4 = vector.broadcast %3 : vector<1x128xf32> to vector<16x128xf32>
    %5 = arith.addf %2, %4 : vector<16x128xf32>
    %cst_5 = arith.constant 5.000000e-01 : f32
    %6 = vector.broadcast %cst_5 : f32 to vector<16x128xf32>
    %7 = arith.mulf %5, %6 : vector<16x128xf32>
    %cst_6 = arith.constant 0.707106769 : f32
    %8 = vector.broadcast %cst_6 : f32 to vector<16x128xf32>
    %9 = arith.mulf %5, %8 : vector<16x128xf32>
    %cst_7 = arith.constant 0.000000e+00 : f32
    %10 = vector.broadcast %cst_7 : f32 to vector<16x128xf32>
    %11 = arith.cmpf oge, %9, %10 : vector<16x128xf32>
    %cst_8 = arith.constant 1.000000e+00 : f32
    %cst_9 = arith.constant -1.000000e+00 : f32
    %12 = vector.broadcast %cst_8 : f32 to vector<16x128xf32>
    %13 = vector.broadcast %cst_9 : f32 to vector<16x128xf32>
    %14 = arith.select %11, %12, %13 : vector<16x128xi1>, vector<16x128xf32>
    %15 = math.absf %9 : vector<16x128xf32>
    %cst_10 = arith.constant 0.327591091 : f32
    %16 = vector.broadcast %cst_10 : f32 to vector<16x128xf32>
    %17 = arith.mulf %16, %15 : vector<16x128xf32>
    %cst_11 = arith.constant 1.000000e+00 : f32
    %18 = vector.broadcast %cst_11 : f32 to vector<16x128xf32>
    %19 = arith.addf %18, %17 : vector<16x128xf32>
    %cst_12 = arith.constant 1.000000e+00 : f32
    %20 = vector.broadcast %cst_12 : f32 to vector<16x128xf32>
    %21 = arith.divf %20, %19 : vector<16x128xf32>
    %cst_13 = arith.constant 1.06140542 : f32
    %22 = vector.broadcast %cst_13 : f32 to vector<16x128xf32>
    %23 = arith.mulf %22, %21 : vector<16x128xf32>
    %cst_14 = arith.constant -1.45315206 : f32
    %24 = vector.broadcast %cst_14 : f32 to vector<16x128xf32>
    %25 = arith.addf %23, %24 : vector<16x128xf32>
    %26 = arith.mulf %25, %21 : vector<16x128xf32>
    %cst_15 = arith.constant 1.42141378 : f32
    %27 = vector.broadcast %cst_15 : f32 to vector<16x128xf32>
    %28 = arith.addf %26, %27 : vector<16x128xf32>
    %29 = arith.mulf %28, %21 : vector<16x128xf32>
    %cst_16 = arith.constant -0.284496725 : f32
    %30 = vector.broadcast %cst_16 : f32 to vector<16x128xf32>
    %31 = arith.addf %29, %30 : vector<16x128xf32>
    %32 = arith.mulf %31, %21 : vector<16x128xf32>
    %cst_17 = arith.constant 0.254829586 : f32
    %33 = vector.broadcast %cst_17 : f32 to vector<16x128xf32>
    %34 = arith.addf %32, %33 : vector<16x128xf32>
    %35 = arith.mulf %34, %21 : vector<16x128xf32>
    %cst_18 = arith.constant 0.000000e+00 : f32
    %36 = vector.broadcast %cst_18 : f32 to vector<16x128xf32>
    %37 = arith.subf %36, %15 : vector<16x128xf32>
    %38 = arith.mulf %37, %15 : vector<16x128xf32>
    %39 = math.exp %38 : vector<16x128xf32>
    %40 = arith.mulf %35, %39 : vector<16x128xf32>
    %cst_19 = arith.constant 1.000000e+00 : f32
    %41 = vector.broadcast %cst_19 : f32 to vector<16x128xf32>
    %42 = arith.subf %41, %40 : vector<16x128xf32>
    %43 = arith.mulf %14, %42 : vector<16x128xf32>
    %cst_20 = arith.constant 1.000000e+00 : f32
    %44 = vector.broadcast %cst_20 : f32 to vector<16x128xf32>
    %45 = arith.addf %44, %43 : vector<16x128xf32>
    %46 = arith.mulf %7, %45 : vector<16x128xf32>
    %c0_21 = arith.constant 0 : index
    %c0_22 = arith.constant 0 : index
    %47 = vector.load %arg4[%c0_21, %c0_22] : memref<128x32xf32, #tpu.memory_space<vmem>>, vector<128x32xf32>
    %cst_23 = arith.constant dense<0.000000e+00> : vector<16x32xf32>
    %48 = tpu.matmul %46, %47, %cst_23 {dimension_numbers = #tpu.dot_dimension_numbers<[1], [0], [0], [1], [0, 0, 1, 1], [], []>} : vector<16x128xf32>, vector<128x32xf32>, vector<16x32xf32> -> vector<16x32xf32>
    %c0_24 = arith.constant 0 : index
    %c0_25 = arith.constant 0 : index
    %49 = vector.load %arg5[%c0_24, %c0_25] : memref<1x32xf32, #tpu.memory_space<vmem>>, vector<1x32xf32>
    %50 = vector.broadcast %49 : vector<1x32xf32> to vector<16x32xf32>
    %51 = arith.addf %48, %50 : vector<16x32xf32>
    %52 = arith.addf %51, %0 : vector<16x32xf32>
    %cst_26 = arith.constant dense<0.000000e+00> : vector<16xf32>
    %53 = vector.multi_reduction <add>, %52, %cst_26 [1] : vector<16x32xf32> to vector<16xf32>
    %54 = vector.shape_cast %53 : vector<16xf32> to vector<16x1xf32>
    %cst_27 = arith.constant 3.200000e+01 : f32
    %55 = vector.broadcast %cst_27 : f32 to vector<16x1xf32>
    %56 = arith.divf %54, %55 : vector<16x1xf32>
    %57 = vector.broadcast %56 : vector<16x1xf32> to vector<16x32xf32>
    %58 = arith.subf %52, %57 : vector<16x32xf32>
    %59 = arith.mulf %58, %58 : vector<16x32xf32>
    %cst_28 = arith.constant dense<0.000000e+00> : vector<16xf32>
    %60 = vector.multi_reduction <add>, %59, %cst_28 [1] : vector<16x32xf32> to vector<16xf32>
    %61 = vector.shape_cast %60 : vector<16xf32> to vector<16x1xf32>
    %cst_29 = arith.constant 3.200000e+01 : f32
    %62 = vector.broadcast %cst_29 : f32 to vector<16x1xf32>
    %63 = arith.divf %61, %62 : vector<16x1xf32>
    %cst_30 = arith.constant 9.99999996E-13 : f32
    %64 = vector.broadcast %cst_30 : f32 to vector<16x1xf32>
    %65 = arith.addf %63, %64 : vector<16x1xf32>
    %66 = math.rsqrt %65 : vector<16x1xf32>
    %67 = vector.broadcast %66 : vector<16x1xf32> to vector<16x32xf32>
    %68 = arith.mulf %58, %67 : vector<16x32xf32>
    %c0_31 = arith.constant 0 : index
    %c0_32 = arith.constant 0 : index
    %69 = vector.load %arg6[%c0_31, %c0_32] : memref<1x32xf32, #tpu.memory_space<vmem>>, vector<1x32xf32>
    %70 = vector.broadcast %69 : vector<1x32xf32> to vector<16x32xf32>
    %71 = arith.mulf %70, %68 : vector<16x32xf32>
    %c0_33 = arith.constant 0 : index
    %c0_34 = arith.constant 0 : index
    %72 = vector.load %arg7[%c0_33, %c0_34] : memref<1x32xf32, #tpu.memory_space<vmem>>, vector<1x32xf32>
    %73 = vector.broadcast %72 : vector<1x32xf32> to vector<16x32xf32>
    %74 = arith.addf %71, %73 : vector<16x32xf32>
    %c0_35 = arith.constant 0 : index
    %c0_36 = arith.constant 0 : index
    %75 = vector.load %arg8[%c0_35, %c0_36] : memref<16x32xf32, #tpu.memory_space<vmem>>, vector<16x32xf32>
    tpu.vector_store %arg8[%c0_35, %c0_36], %74 {strides = array<i32>} : memref<16x32xf32, #tpu.memory_space<vmem>>, vector<16x32xf32>,
    return
  }
  func.func @transform_0(%arg0: i32) -> (i32, i32) {
    %c0_i32 = arith.constant 0 : i32
    %c0_i32_0 = arith.constant 0 : i32
    return %arg0, %c0_i32 : i32, i32
  }
  func.func @transform_1(%arg0: i32) -> (i32, i32) {
    %c0_i32 = arith.constant 0 : i32
    %c0_i32_0 = arith.constant 0 : i32
    %c0_i32_1 = arith.constant 0 : i32
    return %c0_i32, %c0_i32_0 : i32, i32
  }
  func.func @transform_2(%arg0: i32) -> (i32, i32) {
    %c0_i32 = arith.constant 0 : i32
    %c0_i32_0 = arith.constant 0 : i32
    %c0_i32_1 = arith.constant 0 : i32
    return %c0_i32, %c0_i32_0 : i32, i32
  }
  func.func @transform_3(%arg0: i32) -> (i32, i32) {
    %c0_i32 = arith.constant 0 : i32
    %c0_i32_0 = arith.constant 0 : i32
    %c0_i32_1 = arith.constant 0 : i32
    return %c0_i32, %c0_i32_0 : i32, i32
  }
  func.func @transform_4(%arg0: i32) -> (i32, i32) {
    %c0_i32 = arith.constant 0 : i32
    %c0_i32_0 = arith.constant 0 : i32
    %c0_i32_1 = arith.constant 0 : i32
    return %c0_i32, %c0_i32_0 : i32, i32
  }
  func.func @transform_5(%arg0: i32) -> (i32, i32) {
    %c0_i32 = arith.constant 0 : i32
    %c0_i32_0 = arith.constant 0 : i32
    %c0_i32_1 = arith.constant 0 : i32
    return %c0_i32, %c0_i32_0 : i32, i32
  }
  func.func @transform_6(%arg0: i32) -> (i32, i32) {
    %c0_i32 = arith.constant 0 : i32
    %c0_i32_0 = arith.constant 0 : i32
    %c0_i32_1 = arith.constant 0 : i32
    return %c0_i32, %c0_i32_0 : i32, i32
  }
  func.func @transform_7(%arg0: i32) -> (i32, i32) {
    %c0_i32 = arith.constant 0 : i32
    %c0_i32_0 = arith.constant 0 : i32
    return %arg0, %c0_i32 : i32, i32
  }
}

</mosaic_0001>

<llo_original>
// kernel: tpu_custom_call.1
$region0: #{tpu_custom_call.1}
  #allocation0 [shape = 'u32[]', space=smem, size = 0x4, offset = 0x4, fixed_abs, tag = 'smem constant byte address 0x4 - core index']
  #allocation1 [shape = 'u32[144,128]{1,0:T(1,128)}', space=vmem, size = 0x12000, scoped, tag = 'internal scratch']
  %s0 = inlined_call_operand.vmem [shape: f32[16,32], index: 0, kind: input, shape index: {}]
  %s1 = inlined_call_operand.vmem [shape: f32[32,128], index: 1, kind: input, shape index: {}]
  %s2 = inlined_call_operand.vmem [shape: f32[1,128], index: 2, kind: input, shape index: {}]
  %s3 = inlined_call_operand.vmem [shape: f32[128,32], index: 3, kind: input, shape index: {}]
  %s4 = inlined_call_operand.vmem [shape: f32[1,32], index: 4, kind: input, shape index: {}]
  %s5 = inlined_call_operand.vmem [shape: f32[1,32], index: 5, kind: input, shape index: {}]
  %s6 = inlined_call_operand.vmem [shape: f32[1,32], index: 6, kind: input, shape index: {}]
  %s7 = inlined_call_operand.hbm [shape: f32[16,32], index: 7, kind: output, shape index: {}]
  %s8 = sld [smem:[#allocation0]]
  $region38: #{tpu_custom_call.1} parent=0
    _
  %s10 = ssub.s32 1, %s8
  %s11 = scalar_select 0, %s10, %s8
  $region1: #{tpu_custom_call.1} parent=0
    #allocation2 [shape = 'u8[8192]{0}', space=vmem, size = 0x2000, scoped, tag = 'output window, operand 0, single buffered']
    #allocation3 [shape = 's32[1]{0}', space=sflag, size = 0x4, scoped, tag = 'scoped memory for tpu_custom_call.1']
    %12 = vsyncpa [#allocation3], 0
    // Predicated region
    $region2: #{tpu_custom_call.1} parent=1 // pred_check
      _
    $region3: #{tpu_custom_call.1} parent=1 // pred_check_branch
      %14 = sbr.rel (0) target = $region5
    $region4: #{tpu_custom_call.1} parent=1 // pred_region
      _
    $region5: #{tpu_custom_call.1} parent=1 // pred_fallthru
      _
    // Predicated region
    $region6: #{tpu_custom_call.1} parent=1 // pred_check
      _
    $region7: #{tpu_custom_call.1} parent=1 // pred_check_branch
      %16 = sbr.rel (0) target = $region9
    $region8: #{tpu_custom_call.1} parent=1 // pred_region
      _
    $region9: #{tpu_custom_call.1} parent=1 // pred_fallthru
      _
    // Predicated region
    $region10: #{tpu_custom_call.1} parent=1 // pred_check
      _
    $region11: #{tpu_custom_call.1} parent=1 // pred_check_branch
      %18 = sbr.rel (0) target = $region13
    $region12: #{tpu_custom_call.1} parent=1 // pred_region
      _
    $region13: #{tpu_custom_call.1} parent=1 // pred_fallthru
      _
    // Predicated region
    $region14: #{tpu_custom_call.1} parent=1 // pred_check
      _
    $region15: #{tpu_custom_call.1} parent=1 // pred_check_branch
      %20 = sbr.rel (0) target = $region17
    $region16: #{tpu_custom_call.1} parent=1 // pred_region
      _
    $region17: #{tpu_custom_call.1} parent=1 // pred_fallthru
      _
    // Predicated region
    $region18: #{tpu_custom_call.1} parent=1 // pred_check
      _
    $region19: #{tpu_custom_call.1} parent=1 // pred_check_branch
      %22 = sbr.rel (0) target = $region21
    $region20: #{tpu_custom_call.1} parent=1 // pred_region
      _
    $region21: #{tpu_custom_call.1} parent=1 // pred_fallthru
      _
    // Predicated region
    $region22: #{tpu_custom_call.1} parent=1 // pred_check
      _
    $region23: #{tpu_custom_call.1} parent=1 // pred_check_branch
      %24 = sbr.rel (0) target = $region25
    $region24: #{tpu_custom_call.1} parent=1 // pred_region
      _
    $region25: #{tpu_custom_call.1} parent=1 // pred_fallthru
      _
    // Predicated region
    $region26: #{tpu_custom_call.1} parent=1 // pred_check
      _
    $region27: #{tpu_custom_call.1} parent=1 // pred_check_branch
      %26 = sbr.rel (0) target = $region29
    $region28: #{tpu_custom_call.1} parent=1 // pred_region
      _
    $region29: #{tpu_custom_call.1} parent=1 // pred_fallthru
      _
    %v27 = vld [vmem:[%s0] sm:$0xff]
    %v28 = vld [vmem:[%s0 + $0x8] sm:$0xff]
    %v29 = vld [vmem:[%s1] sm:$0xff]
    %v30 = vld [vmem:[%s1 + $0x8] sm:$0xff]
    %v31 = vld [vmem:[%s1 + $0x10] sm:$0xff]
    %v32 = vld [vmem:[%s1 + $0x18] sm:$0xff]
    %v33 = vld [vmem:[%s2] sm:$0x1]
    %v35 = vlaneseq
    %v36 = vshrl.u32 %v35, 7
    %v37 = vsub.s32 0, %v36
    %v38 = vrot.slane %v33, %v37
    %vm40 = vcmask 261120
    %v42 = vsel %vm40, %v27, 0
    %v45 = vsel %vm40, %v28, 0
    %47 = vmatprep.subr.mxu0 0.0
    %48 = vmatpush1.msra.mxu0 %v29
    %49 = vmatprep.subr.mxu0 0.0
    %50 = vmatpush1.msra.mxu0 %v30
    %51 = vmatprep.subr.mxu0 0.0
    %52 = vmatpush1.msra.mxu0 %v31
    %53 = vmatprep.subr.mxu0 0.0
    %54 = vmatpush1.msra.mxu0 %v32
    %55 = vmatprep.subr.mxu0 0.0
    %56 = vmatpush1.msra.mxu0 0.0
    %57 = vmatprep.subr.mxu0 0.0
    %58 = vmatpush1.msra.mxu0 0.0
    %59 = vmatprep.subr.mxu0 0.0
    %60 = vmatpush1.msra.mxu0 0.0
    %61 = vmatprep.subr.mxu0 0.0
    %62 = vmatpush1.msra.mxu0 0.0
    %63 = vmatprep.subr.mxu0 0.0
    %64 = vmatpush1.msra.mxu0 0.0
    %65 = vmatprep.subr.mxu0 0.0
    %66 = vmatpush1.msra.mxu0 0.0
    %67 = vmatprep.subr.mxu0 0.0
    %68 = vmatpush1.msra.mxu0 0.0
    %69 = vmatprep.subr.mxu0 0.0
    %70 = vmatpush1.msra.mxu0 0.0
    %71 = vmatprep.subr.mxu0 0.0
    %72 = vmatpush1.msra.mxu0 0.0
    %73 = vmatprep.subr.mxu0 0.0
    %74 = vmatpush1.msra.mxu0 0.0
    %75 = vmatprep.subr.mxu0 0.0
    %76 = vmatpush1.msra.mxu0 0.0
    %77 = vmatprep.subr.mxu0 0.0
    %78 = vmatpush1.msra.mxu0 0.0
    %79 = vmatprep.subr.mxu0 0.0
    %80 = vmatpush1.msra.mxu0 0.0
    %81 = vmatprep.subr.mxu0 0.0
    %82 = vmatpush1.msra.mxu0 0.0
    %83 = vmatprep.subr.mxu0 0.0
    %84 = vmatpush1.msra.mxu0 0.0
    %85 = vmatprep.subr.mxu0 0.0
    %86 = vmatpush1.msra.mxu0 0.0
    %87 = vmatprep.subr.mxu0 0.0
    %88 = vmatpush1.msra.mxu0 0.0
    %89 = vmatprep.subr.mxu0 0.0
    %90 = vmatpush1.msra.mxu0 0.0
    %91 = vmatprep.subr.mxu0 0.0
    %92 = vmatpush1.msra.mxu0 0.0
    %93 = vmatprep.subr.mxu0 0.0
    %94 = vmatpush1.msra.mxu0 0.0
    %95 = vmatprep.subr.mxu0 0.0
    %96 = vmatpush1.msra.mxu0 0.0
    %97 = vmatprep.subr.mxu0 0.0
    %98 = vmatpush1.msra.mxu0 0.0
    %99 = vmatprep.subr.mxu0 0.0
    %100 = vmatpush1.msra.mxu0 0.0
    %101 = vmatprep.subr.mxu0 0.0
    %102 = vmatpush1.msra.mxu0 0.0
    %103 = vmatprep.subr.mxu0 0.0
    %104 = vmatpush1.msra.mxu0 0.0
    %105 = vmatprep.subr.mxu0 0.0
    %106 = vmatpush1.msra.mxu0 0.0
    %107 = vmatprep.subr.mxu0 0.0
    %108 = vmatpush1.msra.mxu0 0.0
    %109 = vmatprep.subr.mxu0 0.0
    %110 = vmatpush1.msra.mxu0 0.0
    %111 = vmatprep.mubr.f32.mxu0 0.0
    %112 = vmatmul.mubr.f32.gmra.mrb[0].mxu0 %v42
    %v113 = vpop.f32.mrb[0].mxu0
    %v114 = vadd.f32 %v38, %v113
    %v115 = vpop.f32.mrb[0].mxu0
    %116 = vmatprep.mubr.f32.mxu0 0.0
    %117 = vmatmul.mubr.f32.gmra.mrb[0].mxu0 %v45
    %v118 = vpop.f32.mrb[0].mxu0
    %v119 = vadd.f32 %v38, %v118
    %v120 = vpop.f32.mrb[0].mxu0
    %121 = vdwg.mxu0
    %v122 = vmul.f32 %v114, 0.5
    %v123 = vmul.f32 %v119, 0.5
    %v124 = vmul.f32 %v114, 0.70710677
    %v125 = vmul.f32 %v119, 0.70710677
    %vm126 = vcmp.ge.f32.partialorder %v124, 0.0
    %vm127 = vcmp.ge.f32.partialorder %v125, 0.0
    %v128 = vsel %vm126, 1.0, -1.0
    %v129 = vsel %vm127, 1.0, -1.0
    %v130 = vand.u32 2147483647, %v124
    %v131 = vand.u32 2147483647, %v125
    %v132 = vmul.f32 %v130, 0.3275911
    %v133 = vmul.f32 %v131, 0.3275911
    %v134 = vadd.f32 %v132, 1.0
    %v135 = vadd.f32 %v133, 1.0
    %v136 = vrcp.pop %v134
    %v137 = vmul.f32 1.0, %v136
    %v138 = vrcp.pop %v135
    %v139 = vmul.f32 1.0, %v138
    %v140 = vmul.f32 %v137, 1.0614054
    %v141 = vmul.f32 %v139, 1.0614054
    %v142 = vadd.f32 %v140, -1.4531521
    %v143 = vadd.f32 %v141, -1.4531521
    %v144 = vmul.f32 %v142, %v137
    %v145 = vmul.f32 %v143, %v139
    %v146 = vadd.f32 %v144, 1.4214138
    %v147 = vadd.f32 %v145, 1.4214138
    %v148 = vmul.f32 %v146, %v137
    %v149 = vmul.f32 %v147, %v139
    %v150 = vadd.f32 %v148, -0.28449672
    %v151 = vadd.f32 %v149, -0.28449672
    %v152 = vmul.f32 %v150, %v137
    %v153 = vmul.f32 %v151, %v139
    %v154 = vadd.f32 %v152, 0.2548296
    %v155 = vadd.f32 %v153, 0.2548296
    %v156 = vmul.f32 %v154, %v137
    %v157 = vmul.f32 %v155, %v139
    %v158 = vsub.f32 0.0, %v130
    %v159 = vsub.f32 0.0, %v131
    %v160 = vmul.f32 %v158, %v130
    %v161 = vmul.f32 %v159, %v131
    %v162 = vmul.f32 %v160, 1.442695
    %v163 = vpow.pop %v162
    %v164 = vmul.f32 %v161, 1.442695
    %v165 = vpow.pop %v164
    %v166 = vmul.f32 %v156, %v163
    %v167 = vmul.f32 %v157, %v165
    %v168 = vsub.f32 1.0, %v166
    %v169 = vsub.f32 1.0, %v167
    %v170 = vmul.f32 %v128, %v168
    %v171 = vmul.f32 %v129, %v169
    %v172 = vadd.f32 %v170, 1.0
    %v173 = vadd.f32 %v171, 1.0
    %v174 = vmul.f32 %v122, %v172
    %v175 = vmul.f32 %v123, %v173
    %v176 = vld [vmem:[%s3] sm:$0xff]
    %v177 = vld [vmem:[%s3 + $0x8] sm:$0xff]
    %v178 = vld [vmem:[%s3 + $0x10] sm:$0xff]
    %v179 = vld [vmem:[%s3 + $0x18] sm:$0xff]
    %v180 = vld [vmem:[%s3 + $0x20] sm:$0xff]
    %v181 = vld [vmem:[%s3 + $0x28] sm:$0xff]
    %v182 = vld [vmem:[%s3 + $0x30] sm:$0xff]
    %v183 = vld [vmem:[%s3 + $0x38] sm:$0xff]
    %v184 = vld [vmem:[%s3 + $0x40] sm:$0xff]
    %v185 = vld [vmem:[%s3 + $0x48] sm:$0xff]
    %v186 = vld [vmem:[%s3 + $0x50] sm:$0xff]
    %v187 = vld [vmem:[%s3 + $0x58] sm:$0xff]
    %v188 = vld [vmem:[%s3 + $0x60] sm:$0xff]
    %v189 = vld [vmem:[%s3 + $0x68] sm:$0xff]
    %v190 = vld [vmem:[%s3 + $0x70] sm:$0xff]
    %v191 = vld [vmem:[%s3 + $0x78] sm:$0xff]
    %v192 = vld [vmem:[%s4] sm:$0x1]
    %v194 = vlaneseq
    %v195 = vshrl.u32 %v194, 7
    %v196 = vsub.s32 0, %v195
    %v197 = vrot.slane %v192, %v196
    %199 = vmatprep.subr.mxu0 0.0
    %200 = vmatpush1.msra.mxu0 %v176
    %201 = vmatprep.subr.mxu0 0.0
    %202 = vmatpush1.msra.mxu0 %v177
    %203 = vmatprep.subr.mxu0 0.0
    %204 = vmatpush1.msra.mxu0 %v178
    %205 = vmatprep.subr.mxu0 0.0
    %206 = vmatpush1.msra.mxu0 %v179
    %207 = vmatprep.subr.mxu0 0.0
    %208 = vmatpush1.msra.mxu0 %v180
    %209 = vmatprep.subr.mxu0 0.0
    %210 = vmatpush1.msra.mxu0 %v181
    %211 = vmatprep.subr.mxu0 0.0
    %212 = vmatpush1.msra.mxu0 %v182
    %213 = vmatprep.subr.mxu0 0.0
    %214 = vmatpush1.msra.mxu0 %v183
    %215 = vmatprep.subr.mxu0 0.0
    %216 = vmatpush1.msra.mxu0 %v184
    %217 = vmatprep.subr.mxu0 0.0
    %218 = vmatpush1.msra.mxu0 %v185
    %219 = vmatprep.subr.mxu0 0.0
    %220 = vmatpush1.msra.mxu0 %v186
    %221 = vmatprep.subr.mxu0 0.0
    %222 = vmatpush1.msra.mxu0 %v187
    %223 = vmatprep.subr.mxu0 0.0
    %224 = vmatpush1.msra.mxu0 %v188
    %225 = vmatprep.subr.mxu0 0.0
    %226 = vmatpush1.msra.mxu0 %v189
    %227 = vmatprep.subr.mxu0 0.0
    %228 = vmatpush1.msra.mxu0 %v190
    %229 = vmatprep.subr.mxu0 0.0
    %230 = vmatpush1.msra.mxu0 %v191
    %231 = vmatprep.subr.mxu0 0.0
    %232 = vmatpush1.msra.mxu0 0.0
    %233 = vmatprep.subr.mxu0 0.0
    %234 = vmatpush1.msra.mxu0 0.0
    %235 = vmatprep.subr.mxu0 0.0
    %236 = vmatpush1.msra.mxu0 0.0
    %237 = vmatprep.subr.mxu0 0.0
    %238 = vmatpush1.msra.mxu0 0.0
    %239 = vmatprep.subr.mxu0 0.0
    %240 = vmatpush1.msra.mxu0 0.0
    %241 = vmatprep.subr.mxu0 0.0
    %242 = vmatpush1.msra.mxu0 0.0
    %243 = vmatprep.subr.mxu0 0.0
    %244 = vmatpush1.msra.mxu0 0.0
    %245 = vmatprep.subr.mxu0 0.0
    %246 = vmatpush1.msra.mxu0 0.0
    %247 = vmatprep.subr.mxu0 0.0
    %248 = vmatpush1.msra.mxu0 0.0
    %249 = vmatprep.subr.mxu0 0.0
    %250 = vmatpush1.msra.mxu0 0.0
    %251 = vmatprep.subr.mxu0 0.0
    %252 = vmatpush1.msra.mxu0 0.0
    %253 = vmatprep.subr.mxu0 0.0
    %254 = vmatpush1.msra.mxu0 0.0
    %255 = vmatprep.subr.mxu0 0.0
    %256 = vmatpush1.msra.mxu0 0.0
    %257 = vmatprep.subr.mxu0 0.0
    %258 = vmatpush1.msra.mxu0 0.0
    %259 = vmatprep.subr.mxu0 0.0
    %260 = vmatpush1.msra.mxu0 0.0
    %261 = vmatprep.subr.mxu0 0.0
    %262 = vmatpush1.msra.mxu0 0.0
    %263 = vmatprep.mubr.f32.mxu0 0.0
    %264 = vmatmul.mubr.f32.gmra.mrb[0].mxu0 %v174
    %v265 = vpop.f32.mrb[0].mxu0
    %v266 = vadd.f32 %v197, %v265
    %v267 = vpop.f32.mrb[0].mxu0
    %268 = vmatprep.mubr.f32.mxu0 0.0
    %269 = vmatmul.mubr.f32.gmra.mrb[0].mxu0 %v175
    %v270 = vpop.f32.mrb[0].mxu0
    %v271 = vadd.f32 %v197, %v270
    %v272 = vpop.f32.mrb[0].mxu0
    %273 = vdwg.mxu0
    %v274 = vadd.f32 %v266, %v27
    %v275 = vadd.f32 %v271, %v28
    %v276 = vsel %vm40, %v274, 0.0
    %277 = vadd.xlane.f32.xlu0 %v276
    %v278 = vpop.xlane.xlu0 %277
    %v279 = vsel %vm40, %v275, 0.0
    %280 = vadd.xlane.f32.xlu0 %v279
    %v281 = vpop.xlane.xlu0 %280
    %v282 = vrcp.pop 32.0
    %v283 = vmul.f32 %v278, %v282
    %v284 = vmul.f32 %v281, %v282
    %v285 = vsub.f32 %v274, %v283
    %v286 = vsub.f32 %v275, %v284
    %v287 = vmul.f32 %v285, %v285
    %v288 = vmul.f32 %v286, %v286
    %v289 = vsel %vm40, %v287, 0.0
    %290 = vadd.xlane.f32.xlu0 %v289
    %v291 = vpop.xlane.xlu0 %290
    %v292 = vsel %vm40, %v288, 0.0
    %293 = vadd.xlane.f32.xlu0 %v292
    %v294 = vpop.xlane.xlu0 %293
    %v295 = vmul.f32 %v291, %v282
    %v296 = vmul.f32 %v294, %v282
    %v297 = vadd.f32 %v295, 1e-12
    %v298 = vadd.f32 %v296, 1e-12
    %v299 = vrsqrt.pop %v297
    %v300 = vrsqrt.pop %v298
    %v301 = vmul.f32 %v285, %v299
    %v302 = vmul.f32 %v286, %v300
    %v303 = vld [vmem:[%s5] sm:$0x1]
    %v305 = vlaneseq
    %v306 = vshrl.u32 %v305, 7
    %v307 = vsub.s32 0, %v306
    %v308 = vrot.slane %v303, %v307
    %v310 = vmul.f32 %v308, %v301
    %v311 = vmul.f32 %v308, %v302
    %v312 = vld [vmem:[%s6] sm:$0x1]
    %v314 = vlaneseq
    %v315 = vshrl.u32 %v314, 7
    %v316 = vsub.s32 0, %v315
    %v317 = vrot.slane %v312, %v316
    %v319 = vadd.f32 %v310, %v317
    %v320 = vadd.f32 %v311, %v317
    %321 = vst.msk [vmem:[#allocation2] sm:$0xff] %vm40, %v319
    %322 = vst.msk [vmem:[#allocation2 + $0x8] sm:$0xff] %vm40, %v320
    // Predicated region
    $region30: #{tpu_custom_call.1} parent=1 // pred_check
      _
    $region31: #{tpu_custom_call.1} parent=1 // pred_check_branch
      %324 = sbr.rel (0) target = $region33
    $region32: #{tpu_custom_call.1} parent=1 // pred_region
      %s326 = ssub.s32 256, 256
      %327 = vsyncadd [#allocation3], %s326
      %s328 = sshll.u32 [#allocation2], 4
      %s329 = int_to_ptr.vmem [resolvable:$true] %s328
      %334 = dma.vmem_to_hbm [thread:$0]  %s329, 256, %s7, [#allocation3], 128, 128, 8
    $region33: #{tpu_custom_call.1} parent=1 // pred_fallthru
      _
    // Predicated region
    $region34: #{tpu_custom_call.1} parent=1 // pred_check
      _
    $region35: #{tpu_custom_call.1} parent=1 // pred_check_branch
      %336 = sbr.rel (0) target = $region37
    $region36: #{tpu_custom_call.1} parent=1 // pred_region
      %337 = dma.done [#allocation3], 256
    $region37: #{tpu_custom_call.1} parent=1 // pred_fallthru
      _
    %338 = vsyncpa [#allocation3], 1

</llo_original>
